<compile_context>
chip_gen: v6e
topology: v6e:2x2x1
jax: 0.10.0
libtpu: 0.0.40
codegen_flags: <defaults>
</compile_context>

<pallas_src>
import jax
import jax.numpy as jnp
from jax.experimental import pallas as pl
from jax.experimental.pallas import tpu as pltpu

IN_FEATURES = 10
OUT_FEATURES = 5
OUT_PAD = 128            # lane-dense output width (multiple of 128)
K_AUG = IN_FEATURES + 1  # +1: ones column that folds the bias into the matmul


def linear_kernel(x_ref, w_ref, o_ref):
    # x_ref: (B, K_AUG)   w_ref: (K_AUG, OUT_PAD)   o_ref: (B, OUT_PAD)
    # Bias is the last row of w_ref; the last column of x_ref is ones, so the
    # single MXU matmul computes x @ W.T + b directly (no VPU add, no b DMA).
    o_ref[...] = jnp.dot(
        x_ref[...], w_ref[...], preferred_element_type=jnp.float32
    ).astype(o_ref.dtype)


@jax.jit
def linear_pallas(x, w_aug):
    """Forward of nn.Linear(10, 5).

    x:     (B, 10)  f32
    w_aug: (11, 128) f32 — weight.T with bias appended as last row, zero-padded
                           to 128 output lanes; prepared ONCE at init.
    Returns (B, 5) f32.
    """
    B = x.shape[0]
    # Fold the bias: append a ones column. Lives inside the same jit, so XLA
    # fuses it with the kernel's input copy rather than adding an HBM round-trip.
    x_aug = jnp.concatenate([x, jnp.ones((B, 1), x.dtype)], axis=1)  # (B, 11)

    vmem = pltpu.MemorySpace.VMEM
    cost = pl.CostEstimate(
        flops=2 * B * K_AUG * OUT_PAD,
        transcendentals=0,
        bytes_accessed=4 * (B * K_AUG + K_AUG * OUT_PAD + B * OUT_PAD),
    )

    out_pad = pl.pallas_call(
        linear_kernel,
        out_shape=jax.ShapeDtypeStruct((B, OUT_PAD), x.dtype),
        in_specs=[
            pl.BlockSpec(memory_space=vmem),
            pl.BlockSpec(memory_space=vmem),
        ],
        out_specs=pl.BlockSpec(memory_space=vmem),
        cost_estimate=cost,
    )(x_aug, w_aug)

    # Slice back to the logical 5 features OUTSIDE the kernel: the kernel's
    # store stays a full-width unmasked vst; XLA fuses the slice downstream.
    return out_pad[:, :OUT_FEATURES]


def init_params(key, in_features=IN_FEATURES, out_features=OUT_FEATURES):
    """torch.nn.Linear-style init. All layout prep (transpose, bias fold,
    lane padding) is done ONCE here, off the per-call hot path."""
    k_w, k_b = jax.random.split(key)
    bound = 1.0 / jnp.sqrt(jnp.float32(in_features))
    weight = jax.random.uniform(
        k_w, (out_features, in_features), jnp.float32, -bound, bound
    )
    bias = jax.random.uniform(k_b, (out_features,), jnp.float32, -bound, bound)

    # (IN+1, OUT): weight transposed, bias appended as the last row.
    w_fold = jnp.concatenate([weight.T, bias[None, :]], axis=0)
    # Zero-pad the output feature dim 5 -> 128 for a lane-dense store.
    w_aug = (
        jnp.zeros((in_features + 1, OUT_PAD), jnp.float32)
        .at[:, :out_features]
        .set(w_fold)
    )
    return weight, bias, w_aug


if __name__ == "__main__":
    key = jax.random.PRNGKey(0)
    k_params, k_x = jax.random.split(key)

    B = 8
    weight, bias, w_aug = init_params(k_params)
    x = jax.random.normal(k_x, (B, IN_FEATURES), jnp.float32)

    out = jax.block_until_ready(linear_pallas(x, w_aug))

    # Reference: same math as torch.nn.Linear forward (x @ W.T + b).
    ref = x @ weight.T + bias
    assert out.shape == (B, OUT_FEATURES)
    assert jnp.allclose(out, ref, atol=1e-5, rtol=1e-5)

    print("KERNEL_OK")
</pallas_src>

<mosaic_0001>
module attributes {stable_mosaic.version = 11 : i64} {
  func.func @linear_kernel(%arg0: memref<8x11xf32, #tpu.memory_space<vmem>>, %arg1: memref<11x128xf32, #tpu.memory_space<vmem>>, %arg2: memref<8x128xf32, #tpu.memory_space<vmem>>) attributes {dimension_semantics = [], scalar_prefetch = 0 : i64, scratch_operands = 0 : i64, tpu.core_type = #tpu.core_type<tc>} {
    %c0 = arith.constant 0 : index
    %c0_0 = arith.constant 0 : index
    %0 = vector.load %arg0[%c0, %c0_0] : memref<8x11xf32, #tpu.memory_space<vmem>>, vector<8x11xf32>
    %c0_1 = arith.constant 0 : index
    %c0_2 = arith.constant 0 : index
    %1 = vector.load %arg1[%c0_1, %c0_2] : memref<11x128xf32, #tpu.memory_space<vmem>>, vector<11x128xf32>
    %cst = arith.constant dense<0.000000e+00> : vector<8x128xf32>
    %2 = tpu.matmul %0, %1, %cst {dimension_numbers = #tpu.dot_dimension_numbers<[1], [0], [0], [1], [0, 0, 1, 1], [], []>} : vector<8x11xf32>, vector<11x128xf32>, vector<8x128xf32> -> vector<8x128xf32>
    %c0_3 = arith.constant 0 : index
    %c0_4 = arith.constant 0 : index
    %3 = vector.load %arg2[%c0_3, %c0_4] : memref<8x128xf32, #tpu.memory_space<vmem>>, vector<8x128xf32>
    tpu.vector_store %arg2[%c0_3, %c0_4], %2 {strides = array<i32>} : memref<8x128xf32, #tpu.memory_space<vmem>>, vector<8x128xf32>,
    return
  }
}

</mosaic_0001>

<llo_original>
// kernel: linear_pallas.1
$region0: #{linear_pallas.1}
  #allocation0 [shape = 'u32[]', space=smem, size = 0x4, offset = 0x4, fixed_abs, tag = 'smem constant byte address 0x4 - core index']
  #allocation1 [shape = 'u32[144,128]{1,0:T(1,128)}', space=vmem, size = 0x12000, scoped, tag = 'internal scratch']
  %s0 = inlined_call_operand.vmem [shape: f32[8,11], index: 0, kind: input, shape index: {}]
  %s1 = inlined_call_operand.vmem [shape: f32[11,128], index: 1, kind: input, shape index: {}]
  %s2 = inlined_call_operand.hbm [shape: f32[8,128], index: 2, kind: output, shape index: {}]
  %s3 = sld [smem:[#allocation0]]
  $region18: #{linear_pallas.1} parent=0
    _
  %s5 = ssub.s32 1, %s3
  %s6 = scalar_select 0, %s5, %s3
  $region1: #{linear_pallas.1} parent=0
    #allocation2 [shape = 'u8[4096]{0}', space=vmem, size = 0x1000, scoped, tag = 'output window, operand 0, single buffered']
    #allocation3 [shape = 's32[1]{0}', space=sflag, size = 0x4, scoped, tag = 'scoped memory for linear_pallas.1']
    %7 = vsyncpa [#allocation3], 0
    // Predicated region
    $region2: #{linear_pallas.1} parent=1 // pred_check
      _
    $region3: #{linear_pallas.1} parent=1 // pred_check_branch
      %9 = sbr.rel (0) target = $region5
    $region4: #{linear_pallas.1} parent=1 // pred_region
      _
    $region5: #{linear_pallas.1} parent=1 // pred_fallthru
      _
    // Predicated region
    $region6: #{linear_pallas.1} parent=1 // pred_check
      _
    $region7: #{linear_pallas.1} parent=1 // pred_check_branch
      %11 = sbr.rel (0) target = $region9
    $region8: #{linear_pallas.1} parent=1 // pred_region
      _
    $region9: #{linear_pallas.1} parent=1 // pred_fallthru
      _
    %v12 = vld [vmem:[%s0] sm:$0xff]
    %v13 = vld [vmem:[%s1] sm:$0xff]
    %v14 = vld [vmem:[%s1 + $0x8] sm:$0x7]
    %vm15 = vcmask 89088
    %v17 = vsel %vm15, %v12, 0
    %vm19 = vcmask 1042432
    %v21 = vsel %vm19, %v14, 0
    %23 = vmatprep.subr.mxu0 0.0
    %24 = vmatpush1.msra.mxu0 0.0
    %25 = vmatprep.subr.mxu0 0.0
    %26 = vmatpush1.msra.mxu0 0.0
    %27 = vmatprep.subr.mxu0 0.0
    %28 = vmatpush1.msra.mxu0 0.0
    %29 = vmatprep.subr.mxu0 0.0
    %30 = vmatpush1.msra.mxu0 0.0
    %31 = vmatprep.subr.mxu0 0.0
    %32 = vmatpush1.msra.mxu0 0.0
    %33 = vmatprep.subr.mxu0 0.0
    %34 = vmatpush1.msra.mxu0 0.0
    %35 = vmatprep.subr.mxu0 0.0
    %36 = vmatpush1.msra.mxu0 0.0
    %37 = vmatprep.subr.mxu0 0.0
    %38 = vmatpush1.msra.mxu0 0.0
    %39 = vmatprep.subr.mxu0 0.0
    %40 = vmatpush1.msra.mxu0 0.0
    %41 = vmatprep.subr.mxu0 0.0
    %42 = vmatpush1.msra.mxu0 0.0
    %43 = vmatprep.subr.mxu0 0.0
    %44 = vmatpush1.msra.mxu0 0.0
    %45 = vmatprep.subr.mxu0 0.0
    %46 = vmatpush1.msra.mxu0 0.0
    %47 = vmatprep.subr.mxu0 0.0
    %48 = vmatpush1.msra.mxu0 0.0
    %49 = vmatprep.subr.mxu0 0.0
    %50 = vmatpush1.msra.mxu0 0.0
    %51 = vmatprep.subr.mxu0 0.0
    %52 = vmatpush1.msra.mxu0 %v21
    %53 = vmatprep.subr.mxu0 0.0
    %54 = vmatpush1.msra.mxu0 %v13
    %55 = vmatprep.subr.mxu0 0.0
    %56 = vmatpush2.msra.mxu0 0.0
    %57 = vmatprep.subr.mxu0 0.0
    %58 = vmatpush2.msra.mxu0 0.0
    %59 = vmatprep.subr.mxu0 0.0
    %60 = vmatpush2.msra.mxu0 0.0
    %61 = vmatprep.subr.mxu0 0.0
    %62 = vmatpush2.msra.mxu0 0.0
    %63 = vmatprep.subr.mxu0 0.0
    %64 = vmatpush2.msra.mxu0 0.0
    %65 = vmatprep.subr.mxu0 0.0
    %66 = vmatpush2.msra.mxu0 0.0
    %67 = vmatprep.subr.mxu0 0.0
    %68 = vmatpush2.msra.mxu0 0.0
    %69 = vmatprep.subr.mxu0 0.0
    %70 = vmatpush2.msra.mxu0 0.0
    %71 = vmatprep.subr.mxu0 0.0
    %72 = vmatpush2.msra.mxu0 0.0
    %73 = vmatprep.subr.mxu0 0.0
    %74 = vmatpush2.msra.mxu0 0.0
    %75 = vmatprep.subr.mxu0 0.0
    %76 = vmatpush2.msra.mxu0 0.0
    %77 = vmatprep.subr.mxu0 0.0
    %78 = vmatpush2.msra.mxu0 0.0
    %79 = vmatprep.subr.mxu0 0.0
    %80 = vmatpush2.msra.mxu0 0.0
    %81 = vmatprep.subr.mxu0 0.0
    %82 = vmatpush2.msra.mxu0 0.0
    %83 = vmatprep.subr.mxu0 0.0
    %84 = vmatpush2.msra.mxu0 0.0
    %85 = vmatprep.subr.mxu0 0.0
    %86 = vmatpush2.msra.mxu0 0.0
    %87 = vmatprep.mubr.f32.mxu0 0.0
    %88 = vmatmul.mubr.f32.gmra.mxu0 %v17
    %v89 = vpop.f32.mrf.mxu0
    %v90 = vadd.f32 0.0, %v89
    %v91 = vpop.f32.mrf.mxu0
    %92 = vdwg.mxu0
    %93 = vst [vmem:[#allocation2] sm:$0xff] %v90
    // Predicated region
    $region10: #{linear_pallas.1} parent=1 // pred_check
      _
    $region11: #{linear_pallas.1} parent=1 // pred_check_branch
      %95 = sbr.rel (0) target = $region13
    $region12: #{linear_pallas.1} parent=1 // pred_region
      %s97 = ssub.s32 128, 128
      %98 = vsyncadd [#allocation3], %s97
      %s100 = sshll.u32 [#allocation2], 4
      %s101 = int_to_ptr.vmem [resolvable:$true] %s100
      %103 = dma.vmem_to_hbm [thread:$0]  %s101, 128, %s2, [#allocation3]
    $region13: #{linear_pallas.1} parent=1 // pred_fallthru
      _
    // Predicated region
    $region14: #{linear_pallas.1} parent=1 // pred_check
      _
    $region15: #{linear_pallas.1} parent=1 // pred_check_branch
      %105 = sbr.rel (0) target = $region17
    $region16: #{linear_pallas.1} parent=1 // pred_region
      %106 = dma.done [#allocation3], 128
    $region17: #{linear_pallas.1} parent=1 // pred_fallthru
      _
    %107 = vsyncpa [#allocation3], 1

</llo_original>
